<compile_context>
chip_gen: v7x
topology: tpu7x:2x2x1
jax: 0.10.0
libtpu: 0.0.40
codegen_flags: <defaults>
</compile_context>

<pallas_src>
import math
import numpy as np
import jax
import jax.numpy as jnp
from jax.experimental import pallas as pl
from jax.experimental.pallas import tpu as pltpu


# ------------------------------------------------------------------------- Pallas kernels

def _scalogram_kernel(xp_ref, w_ref, out_ref):
    """First-order scattering: modulus of a complex Morlet correlation (one batch row).

    xp_ref : (1, L1, T)   im2col patches of the zero-padded audio row (T on lanes)
    w_ref  : (2*F1, L1)   stacked [real ; imag] filter taps
    out_ref: (1, F1, T)   |x (*) conj(psi_k)|
    """
    f1 = out_ref.shape[1]
    y = jnp.dot(w_ref[...], xp_ref[0], preferred_element_type=jnp.float32)   # (2*F1, T)  -> MXU
    out_ref[0] = jnp.sqrt(y[:f1] * y[:f1] + y[f1:] * y[f1:])


def _second_order_kernel(scal_ref, wt_ref, wf_ref, af_ref, at_ref, out_ref):
    """Fused 2nd-order time conv + jagged-masked freq conv + freq/time window averages.

    One grid step handles one (batch b, 2nd-order time wavelet kt) pair.  All heavy math is
    MXU matmuls with the time axis kept on lanes throughout.

    scal_ref : (1, F1, T+Lt-1)    time-padded scalogram row for batch b
    wt_ref   : (1, T+Lt-1, 2*T)   banded Toeplitz weight of the kt-th time wavelet (re | im cols)
    wf_ref   : (1, 2*Kf*F1, F1)   freq-axis Toeplitz weight with the jagged mask baked in
    af_ref   : (Kf*F1o, Kf*F1)    block-diag frequency-window averaging matrix (identity if off)
    at_ref   : (T, To)            time-window averaging matrix (identity if off)
    out_ref  : (1, Kf, F1o, To)   slice of the final jtfst tensor
    """
    _, kf, f1o, t_out = out_ref.shape
    t = wt_ref.shape[2] // 2
    half = wf_ref.shape[1] // 2

    # (1) time conv with the kt-th wavelet + modulus:     (F1, Tp) @ (Tp, 2T) -> MXU
    y = jnp.dot(scal_ref[0], wt_ref[0], preferred_element_type=jnp.float32)     # (F1, 2T)
    u = jnp.sqrt(y[:, :t] * y[:, :t] + y[:, t:] * y[:, t:])                     # (F1, T)

    # (2) jagged-masked freq conv + modulus:              (2KfF1, F1) @ (F1, T) -> MXU
    z = jnp.dot(wf_ref[0], u, preferred_element_type=jnp.float32)               # (2*Kf*F1, T)
    m = jnp.sqrt(z[:half] * z[:half] + z[half:] * z[half:])                     # (Kf*F1, T)

    # (3) frequency-window and time-window box averages as matmuls (lane-dense, MXU)
    m = jnp.dot(af_ref[...], m, preferred_element_type=jnp.float32)             # (Kf*F1o, T)
    m = jnp.dot(m, at_ref[...], preferred_element_type=jnp.float32)             # (Kf*F1o, To)

    out_ref[...] = m.reshape(1, kf, f1o, t_out)


# ------------------------------------------------------------------------- Pallas wrappers

def scalogram_pallas(x2d, w_ri, f1):
    """x2d: (B, T) f32, w_ri: (2*F1, L1) f32  ->  scalogram (B, F1, T)."""
    b, t = x2d.shape
    two_f1, taps = w_ri.shape
    pad_l = taps // 2
    pad_r = taps - 1 - pad_l
    xp = jnp.pad(x2d.astype(jnp.float32), ((0, 0), (pad_l, pad_r)))              # (B, T+L1-1)
    # im2col on the XLA side (single gather, tiny tensor) so the kernel is a pure MXU matmul
    gather_idx = np.arange(taps)[:, None] + np.arange(t)[None, :]                # (L1, T)
    xpatch = xp[:, gather_idx]                                                   # (B, L1, T)
    return pl.pallas_call(
        _scalogram_kernel,
        out_shape=jax.ShapeDtypeStruct((b, f1, t), jnp.float32),
        grid=(b,),
        in_specs=[
            pl.BlockSpec((1, taps, t), lambda i: (i, 0, 0)),
            pl.BlockSpec((two_f1, taps), lambda i: (0, 0)),
        ],
        out_specs=pl.BlockSpec((1, f1, t), lambda i: (i, 0, 0)),
        compiler_params=pltpu.CompilerParams(dimension_semantics=("parallel",)),
    )(xpatch, w_ri)


def second_order_pallas(scal, wt_toep, wf_masked, af, at, lt, kf):
    """Fused second-order stage.

    scal     : (B, F1, T) scalogram
    wt_toep  : (Kt, T+Lt-1, 2*T) banded Toeplitz time-conv weights
    wf_masked: (Kt, 2*Kf*F1, F1) masked freq-conv Toeplitz weights
    af       : (Kf*F1', Kf*F1) freq-average matrix, at: (T, T') time-average matrix
    returns  : (B, Kt*Kf, F1', T')
    """
    b, f1, t = scal.shape
    kt = wt_toep.shape[0]
    f1_out = af.shape[0] // kf
    t_out = at.shape[1]
    pad_l = lt // 2
    pad_r = lt - 1 - pad_l
    scal_pad = jnp.pad(scal, ((0, 0), (0, 0), (pad_l, pad_r)))                   # (B, F1, T+Lt-1)
    tp = t + lt - 1
    return pl.pallas_call(
        _second_order_kernel,
        out_shape=jax.ShapeDtypeStruct((b, kt * kf, f1_out, t_out), jnp.float32),
        grid=(b, kt),                       # leading parallel extent = B (even) for v7x 2 TCs
        in_specs=[
            pl.BlockSpec((1, f1, tp), lambda i, j: (i, 0, 0)),
            pl.BlockSpec((1, tp, 2 * t), lambda i, j: (j, 0, 0)),
            pl.BlockSpec((1, 2 * kf * f1, f1), lambda i, j: (j, 0, 0)),
            pl.BlockSpec((kf * f1_out, kf * f1), lambda i, j: (0, 0)),
            pl.BlockSpec((t, t_out), lambda i, j: (0, 0)),
        ],
        out_specs=pl.BlockSpec((1, kf, f1_out, t_out), lambda i, j: (i, j, 0, 0)),
        compiler_params=pltpu.CompilerParams(
            dimension_semantics=("parallel", "parallel")),
    )(scal_pad, wt_toep, wf_masked, af, at)


# ------------------------------------------------------------------------- host-side weights

def make_morlet_bank(sr, j, q, length):
    """Deterministic truncated complex Morlet bank.  Returns (wr (K,L), wi (K,L), freqs desc)."""
    n_filt = j * q
    freqs = [float(sr / 2.0 * 2.0 ** (-(i + 1) / q)) for i in range(n_filt)]      # descending
    t = np.arange(length) - length // 2
    wr, wi = [], []
    for f in freqs:
        sigma = q * sr / (2.0 * math.pi * f)
        window = np.exp(-0.5 * (t / sigma) ** 2)
        phase = 2.0 * math.pi * f * t / sr
        pr = window * np.cos(phase)
        pi_ = window * np.sin(phase)
        norm = math.sqrt(float(np.sum(pr * pr + pi_ * pi_))) + 1e-12
        wr.append(pr / norm)
        wi.append(pi_ / norm)
    return np.stack(wr).astype(np.float32), np.stack(wi).astype(np.float32), freqs


def _time_toeplitz(wr, wi, t):
    """(K, L) complex filters -> (K, t+L-1, 2*t) banded Toeplitz for 'same' correlation.

    (x_pad @ W_k)[c]       = sum_l x_pad[c + l] * wr[k, l]   (real columns 0..t-1)
    (x_pad @ W_k)[t + c]   = sum_l x_pad[c + l] * wi[k, l]   (imag columns t..2t-1)
    """
    k, L = wr.shape
    tp = t + L - 1
    W = np.zeros((k, tp, 2 * t), np.float32)
    cols = np.arange(t)
    for l in range(L):
        rows = cols + l
        for kk in range(k):
            W[kk, rows, cols] = wr[kk, l]
            W[kk, rows, t + cols] = wi[kk, l]
    return W


def _freq_toeplitz_masked(wr, wi, f1, masks):
    """(Kf, Lf) freq wavelets + (Kt, F1) jagged masks -> (Kt, 2*Kf*F1, F1) weights.

    Rows are ordered [real block ; imag block], each block (kf, fo) flat with fo minor.
    The jagged mask (first-order band kept iff freqs_1 >= freq_t) is folded into the columns.
    """
    kf, lf = wr.shape
    pad_l = lf // 2
    base = np.zeros((2, kf, f1, f1), np.float32)
    for k in range(kf):
        for fo in range(f1):
            for l in range(lf):
                f = fo + l - pad_l
                if 0 <= f < f1:
                    base[0, k, fo, f] = wr[k, l]
                    base[1, k, fo, f] = wi[k, l]
    base = base.reshape(2 * kf * f1, f1)
    return (base[None, :, :] * masks[:, None, :]).astype(np.float32)             # (Kt, 2KfF1, F1)


def _avg_matrix_right(n, win):
    """(n, n//win): x @ A == non-overlapping window mean along the last axis (remainder dropped)."""
    n_out = n // win
    A = np.zeros((n, n_out), np.float32)
    for o in range(n_out):
        A[o * win:(o + 1) * win, o] = 1.0 / win
    return A


def _avg_matrix_left_blockdiag(kf, f1, win):
    """(kf*f1o, kf*f1): A @ x == window mean over the F1 rows, block-diagonal over Kf filters."""
    f1o = f1 // win
    A = np.zeros((kf * f1o, kf * f1), np.float32)
    for k in range(kf):
        for o in range(f1o):
            A[k * f1o + o, k * f1 + o * win:k * f1 + (o + 1) * win] = 1.0 / win
    return A


# ------------------------------------------------------------------------- JTFST1D

class JTFST1DPallas:
    def __init__(self, sr, J_1=2, J_2_f=2, J_2_t=3, Q_1=8, Q_2_f=1, Q_2_t=1,
                 should_avg_f=True, should_avg_t=True,
                 avg_win_f=2, avg_win_t=4, reflect_f=False):
        self.sr = sr
        self.should_avg_f = should_avg_f
        self.should_avg_t = should_avg_t
        self.avg_win_f = avg_win_f
        self.avg_win_t = avg_win_t

        # synthetic deterministic filterbanks (no checkpoint)
        w1_r, w1_i, self.freqs_1 = make_morlet_bank(sr, J_1, Q_1, length=65)     # audio_to_scalogram
        wt_r, wt_i, self.freqs_t = make_morlet_bank(sr, J_2_t, Q_2_t, length=33)  # conv_t (jagged)
        wf_r, wf_i, self.freqs_f = make_morlet_bank(sr, J_2_f, Q_2_f, length=9)   # conv_f
        self.orientations_f = [1.0] * len(self.freqs_f)
        # TODO(synk): reflect_f=True would add time-reversed (orientation=-1) frequency wavelets.

        self.f1 = w1_r.shape[0]
        self.kt = wt_r.shape[0]
        self.kf = wf_r.shape[0]
        self.lt = wt_r.shape[1]
        self._wt_r, self._wt_i = wt_r, wt_i

        # first-order filters stacked [real ; imag], taps on the contraction axis (MXU operand)
        self.w1_ri = jnp.asarray(np.concatenate([w1_r, w1_i], axis=0))            # (2*F1, L1)

        # jagged mask baked into the per-kt frequency Toeplitz weights
        freqs_1_arr = np.asarray(self.freqs_1, np.float32)
        masks = np.stack([(freqs_1_arr >= ft).astype(np.float32) for ft in self.freqs_t])
        self.wf_masked = jnp.asarray(_freq_toeplitz_masked(wf_r, wf_i, self.f1, masks))

        # frequency-window averaging matrix (identity when averaging disabled)
        if should_avg_f and avg_win_f is not None and avg_win_f > 1:
            af = _avg_matrix_left_blockdiag(self.kf, self.f1, avg_win_f)
        else:
            af = np.eye(self.kf * self.f1, dtype=np.float32)
        self.af = jnp.asarray(af)

        # T-dependent weights (time Toeplitz, time-average matrix) are built lazily, cached per T
        self._t_cache = {}
        self._forward = jax.jit(self._forward_impl)

    # ---- host-side, per-signal-length weight construction --------------------------------
    def _t_weights(self, t):
        if t in self._t_cache:
            return self._t_cache[t]
        wt_toep = jnp.asarray(_time_toeplitz(self._wt_r, self._wt_i, t))          # (Kt, t+Lt-1, 2t)
        if self.should_avg_t:
            win_t = self.avg_win_t
            if win_t is None:
                win_t = int(round(self.sr / self.freqs_t[-1]))
            at = _avg_matrix_right(t, win_t)
        else:
            at = np.eye(t, dtype=np.float32)
        at = jnp.asarray(at)
        self._t_cache[t] = (wt_toep, at)
        return wt_toep, at

    # ---- jitted device path: 2 pallas_calls + fused pad/gather glue ----------------------
    def _forward_impl(self, x2d, w1_ri, wt_toep, wf_masked, af, at):
        scalogram = scalogram_pallas(x2d, w1_ri, self.f1)                         # (B, F1, T)
        jtfst = second_order_pallas(scalogram, wt_toep, wf_masked, af, at,
                                    self.lt, self.kf)                             # (B, Kt*Kf, F1', T')
        return scalogram, jtfst

    def __call__(self, x):
        b, c, t = x.shape
        assert c == 1
        wt_toep, at = self._t_weights(t)
        scalogram, jtfst = self._forward(x.reshape(b, t), self.w1_ri, wt_toep,
                                         self.wf_masked, self.af, at)
        freqs_2 = [(freq_f, freq_t, orientation)
                   for freq_t in self.freqs_t
                   for freq_f, orientation in zip(self.freqs_f, self.orientations_f)]
        return scalogram, self.freqs_1, jtfst, freqs_2


# ------------------------------------------------------------------------- demo

if __name__ == "__main__":
    key = jax.random.PRNGKey(0)
    B, T = 2, 128
    sr = 1024.0
    x = jax.random.normal(key, (B, 1, T), dtype=jnp.float32)

    model = JTFST1DPallas(sr, J_1=2, Q_1=8, J_2_t=3, Q_2_t=1, J_2_f=2, Q_2_f=1,
                          should_avg_f=True, should_avg_t=True,
                          avg_win_f=2, avg_win_t=4, reflect_f=False)

    scalogram, freqs_1, jtfst, freqs_2 = model(x)
    jax.block_until_ready((scalogram, jtfst))

    F1 = 2 * 8           # J_1 * Q_1
    Kt, Kf = 3, 2        # J_2_t*Q_2_t, J_2_f*Q_2_f
    assert scalogram.shape == (B, F1, T), scalogram.shape
    assert jtfst.shape == (B, Kt * Kf, F1 // 2, T // 4), jtfst.shape
    assert len(freqs_1) == F1 and len(freqs_2) == Kt * Kf
    assert bool(jnp.all(jnp.isfinite(scalogram))) and bool(jnp.all(jnp.isfinite(jtfst)))
    print("KERNEL_OK")
</pallas_src>

<mosaic_0001>
module attributes {stable_mosaic.version = 11 : i64} {
  func.func @_scalogram_kernel(%arg0: i32, %arg1: memref<1x65x128xf32, #tpu.memory_space<vmem>>, %arg2: memref<32x65xf32, #tpu.memory_space<vmem>>, %arg3: memref<1x16x128xf32, #tpu.memory_space<vmem>>) attributes {dimension_semantics = [#tpu.dimension_semantics<parallel>], iteration_bounds = array<i64: 2>, scalar_prefetch = 0 : i64, scratch_operands = 0 : i64, tpu.core_type = #tpu.core_type<tc>, window_params = [{transform_indices = @transform_0, window_bounds = array<i64: 1, 65, 128>}, {pipeline_mode = #tpu.pipeline_mode<synchronous>, transform_indices = @transform_1, window_bounds = array<i64: 32, 65>}, {transform_indices = @transform_2, window_bounds = array<i64: 1, 16, 128>}]} {
    %c0 = arith.constant 0 : index
    %c0_0 = arith.constant 0 : index
    %0 = vector.load %arg2[%c0, %c0_0] : memref<32x65xf32, #tpu.memory_space<vmem>>, vector<32x65xf32>
    %c0_1 = arith.constant 0 : index
    %c0_2 = arith.constant 0 : index
    %c0_3 = arith.constant 0 : index
    %1 = vector.load %arg1[%c0_1, %c0_2, %c0_3] : memref<1x65x128xf32, #tpu.memory_space<vmem>>, vector<1x65x128xf32>
    %2 = vector.shape_cast %1 : vector<1x65x128xf32> to vector<65x128xf32>
    %cst = arith.constant dense<0.000000e+00> : vector<32x128xf32>
    %3 = tpu.matmul %0, %2, %cst {dimension_numbers = #tpu.dot_dimension_numbers<[1], [0], [0], [1], [0, 0, 1, 1], [], []>} : vector<32x65xf32>, vector<65x128xf32>, vector<32x128xf32> -> vector<32x128xf32>
    %4 = vector.extract_strided_slice %3 {offsets = [0, 0], sizes = [16, 128], strides = [1, 1]} : vector<32x128xf32> to vector<16x128xf32>
    %5 = vector.extract_strided_slice %3 {offsets = [0, 0], sizes = [16, 128], strides = [1, 1]} : vector<32x128xf32> to vector<16x128xf32>
    %6 = arith.mulf %4, %5 : vector<16x128xf32>
    %7 = vector.extract_strided_slice %3 {offsets = [16, 0], sizes = [16, 128], strides = [1, 1]} : vector<32x128xf32> to vector<16x128xf32>
    %8 = vector.extract_strided_slice %3 {offsets = [16, 0], sizes = [16, 128], strides = [1, 1]} : vector<32x128xf32> to vector<16x128xf32>
    %9 = arith.mulf %7, %8 : vector<16x128xf32>
    %10 = arith.addf %6, %9 : vector<16x128xf32>
    %11 = math.sqrt %10 : vector<16x128xf32>
    %c0_4 = arith.constant 0 : index
    %c0_5 = arith.constant 0 : index
    %c0_6 = arith.constant 0 : index
    %12 = vector.load %arg3[%c0_4, %c0_5, %c0_6] : memref<1x16x128xf32, #tpu.memory_space<vmem>>, vector<1x16x128xf32>
    %13 = vector.shape_cast %12 : vector<1x16x128xf32> to vector<16x128xf32>
    %14 = vector.shape_cast %11 : vector<16x128xf32> to vector<1x16x128xf32>
    tpu.vector_store %arg3[%c0_4, %c0_5, %c0_6], %14 {strides = array<i32>} : memref<1x16x128xf32, #tpu.memory_space<vmem>>, vector<1x16x128xf32>,
    return
  }
  func.func @transform_0(%arg0: i32) -> (i32, i32, i32) {
    %c0_i32 = arith.constant 0 : i32
    %c0_i32_0 = arith.constant 0 : i32
    %c0_i32_1 = arith.constant 0 : i32
    return %arg0, %c0_i32, %c0_i32_0 : i32, i32, i32
  }
  func.func @transform_1(%arg0: i32) -> (i32, i32) {
    %c0_i32 = arith.constant 0 : i32
    %c0_i32_0 = arith.constant 0 : i32
    %c0_i32_1 = arith.constant 0 : i32
    return %c0_i32, %c0_i32_0 : i32, i32
  }
  func.func @transform_2(%arg0: i32) -> (i32, i32, i32) {
    %c0_i32 = arith.constant 0 : i32
    %c0_i32_0 = arith.constant 0 : i32
    %c0_i32_1 = arith.constant 0 : i32
    return %arg0, %c0_i32, %c0_i32_0 : i32, i32, i32
  }
}

module attributes {stable_mosaic.version = 11 : i64} {
  func.func @_second_order_kernel(%arg0: i32, %arg1: i32, %arg2: memref<1x16x160xf32, #tpu.memory_space<vmem>>, %arg3: memref<1x160x256xf32, #tpu.memory_space<vmem>>, %arg4: memref<1x64x16xf32, #tpu.memory_space<vmem>>, %arg5: memref<16x32xf32, #tpu.memory_space<vmem>>, %arg6: memref<128x32xf32, #tpu.memory_space<vmem>>, %arg7: memref<1x2x8x32xf32, #tpu.memory_space<vmem>>) attributes {dimension_semantics = [#tpu.dimension_semantics<parallel>, #tpu.dimension_semantics<parallel>], iteration_bounds = array<i64: 2, 3>, scalar_prefetch = 0 : i64, scratch_operands = 0 : i64, tpu.core_type = #tpu.core_type<tc>, window_params = [{transform_indices = @transform_0, window_bounds = array<i64: 1, 16, 160>}, {transform_indices = @transform_1, window_bounds = array<i64: 1, 160, 256>}, {transform_indices = @transform_2, window_bounds = array<i64: 1, 64, 16>}, {pipeline_mode = #tpu.pipeline_mode<synchronous>, transform_indices = @transform_3, window_bounds = array<i64: 16, 32>}, {pipeline_mode = #tpu.pipeline_mode<synchronous>, transform_indices = @transform_4, window_bounds = array<i64: 128, 32>}, {transform_indices = @transform_5, window_bounds = array<i64: 1, 2, 8, 32>}]} {
    %c0 = arith.constant 0 : index
    %c0_0 = arith.constant 0 : index
    %c0_1 = arith.constant 0 : index
    %0 = vector.load %arg2[%c0, %c0_0, %c0_1] : memref<1x16x160xf32, #tpu.memory_space<vmem>>, vector<1x16x160xf32>
    %1 = vector.shape_cast %0 : vector<1x16x160xf32> to vector<16x160xf32>
    %c0_2 = arith.constant 0 : index
    %c0_3 = arith.constant 0 : index
    %c0_4 = arith.constant 0 : index
    %2 = vector.load %arg3[%c0_2, %c0_3, %c0_4] : memref<1x160x256xf32, #tpu.memory_space<vmem>>, vector<1x160x256xf32>
    %3 = vector.shape_cast %2 : vector<1x160x256xf32> to vector<160x256xf32>
    %cst = arith.constant dense<0.000000e+00> : vector<16x256xf32>
    %4 = tpu.matmul %1, %3, %cst {dimension_numbers = #tpu.dot_dimension_numbers<[1], [0], [0], [1], [0, 0, 1, 1], [], []>} : vector<16x160xf32>, vector<160x256xf32>, vector<16x256xf32> -> vector<16x256xf32>
    %5 = vector.extract_strided_slice %4 {offsets = [0, 0], sizes = [16, 128], strides = [1, 1]} : vector<16x256xf32> to vector<16x128xf32>
    %6 = vector.extract_strided_slice %4 {offsets = [0, 0], sizes = [16, 128], strides = [1, 1]} : vector<16x256xf32> to vector<16x128xf32>
    %7 = arith.mulf %5, %6 : vector<16x128xf32>
    %8 = vector.extract_strided_slice %4 {offsets = [0, 128], sizes = [16, 128], strides = [1, 1]} : vector<16x256xf32> to vector<16x128xf32>
    %9 = vector.extract_strided_slice %4 {offsets = [0, 128], sizes = [16, 128], strides = [1, 1]} : vector<16x256xf32> to vector<16x128xf32>
    %10 = arith.mulf %8, %9 : vector<16x128xf32>
    %11 = arith.addf %7, %10 : vector<16x128xf32>
    %12 = math.sqrt %11 : vector<16x128xf32>
    %c0_5 = arith.constant 0 : index
    %c0_6 = arith.constant 0 : index
    %c0_7 = arith.constant 0 : index
    %13 = vector.load %arg4[%c0_5, %c0_6, %c0_7] : memref<1x64x16xf32, #tpu.memory_space<vmem>>, vector<1x64x16xf32>
    %14 = vector.shape_cast %13 : vector<1x64x16xf32> to vector<64x16xf32>
    %cst_8 = arith.constant dense<0.000000e+00> : vector<64x128xf32>
    %15 = tpu.matmul %14, %12, %cst_8 {dimension_numbers = #tpu.dot_dimension_numbers<[1], [0], [0], [1], [0, 0, 1, 1], [], []>} : vector<64x16xf32>, vector<16x128xf32>, vector<64x128xf32> -> vector<64x128xf32>
    %16 = vector.extract_strided_slice %15 {offsets = [0, 0], sizes = [32, 128], strides = [1, 1]} : vector<64x128xf32> to vector<32x128xf32>
    %17 = vector.extract_strided_slice %15 {offsets = [0, 0], sizes = [32, 128], strides = [1, 1]} : vector<64x128xf32> to vector<32x128xf32>
    %18 = arith.mulf %16, %17 : vector<32x128xf32>
    %19 = vector.extract_strided_slice %15 {offsets = [32, 0], sizes = [32, 128], strides = [1, 1]} : vector<64x128xf32> to vector<32x128xf32>
    %20 = vector.extract_strided_slice %15 {offsets = [32, 0], sizes = [32, 128], strides = [1, 1]} : vector<64x128xf32> to vector<32x128xf32>
    %21 = arith.mulf %19, %20 : vector<32x128xf32>
    %22 = arith.addf %18, %21 : vector<32x128xf32>
    %23 = math.sqrt %22 : vector<32x128xf32>
    %c0_9 = arith.constant 0 : index
    %c0_10 = arith.constant 0 : index
    %24 = vector.load %arg5[%c0_9, %c0_10] : memref<16x32xf32, #tpu.memory_space<vmem>>, vector<16x32xf32>
    %cst_11 = arith.constant dense<0.000000e+00> : vector<16x128xf32>
    %25 = tpu.matmul %24, %23, %cst_11 {dimension_numbers = #tpu.dot_dimension_numbers<[1], [0], [0], [1], [0, 0, 1, 1], [], []>} : vector<16x32xf32>, vector<32x128xf32>, vector<16x128xf32> -> vector<16x128xf32>
    %c0_12 = arith.constant 0 : index
    %c0_13 = arith.constant 0 : index
    %26 = vector.load %arg6[%c0_12, %c0_13] : memref<128x32xf32, #tpu.memory_space<vmem>>, vector<128x32xf32>
    %cst_14 = arith.constant dense<0.000000e+00> : vector<16x32xf32>
    %27 = tpu.matmul %25, %26, %cst_14 {dimension_numbers = #tpu.dot_dimension_numbers<[1], [0], [0], [1], [0, 0, 1, 1], [], []>} : vector<16x128xf32>, vector<128x32xf32>, vector<16x32xf32> -> vector<16x32xf32>
    %28 = vector.shape_cast %27 : vector<16x32xf32> to vector<1x2x8x32xf32>
    %c0_15 = arith.constant 0 : index
    %c0_16 = arith.constant 0 : index
    %c0_17 = arith.constant 0 : index
    %c0_18 = arith.constant 0 : index
    %29 = vector.load %arg7[%c0_15, %c0_16, %c0_17, %c0_18] : memref<1x2x8x32xf32, #tpu.memory_space<vmem>>, vector<1x2x8x32xf32>
    tpu.vector_store %arg7[%c0_15, %c0_16, %c0_17, %c0_18], %28 {strides = array<i32>} : memref<1x2x8x32xf32, #tpu.memory_space<vmem>>, vector<1x2x8x32xf32>,
    return
  }
  func.func @transform_0(%arg0: i32, %arg1: i32) -> (i32, i32, i32) {
    %c0_i32 = arith.constant 0 : i32
    %c0_i32_0 = arith.constant 0 : i32
    %c0_i32_1 = arith.constant 0 : i32
    return %arg0, %c0_i32, %c0_i32_0 : i32, i32, i32
  }
  func.func @transform_1(%arg0: i32, %arg1: i32) -> (i32, i32, i32) {
    %c0_i32 = arith.constant 0 : i32
    %c0_i32_0 = arith.constant 0 : i32
    %c0_i32_1 = arith.constant 0 : i32
    return %arg1, %c0_i32, %c0_i32_0 : i32, i32, i32
  }
  func.func @transform_2(%arg0: i32, %arg1: i32) -> (i32, i32, i32) {
    %c0_i32 = arith.constant 0 : i32
    %c0_i32_0 = arith.constant 0 : i32
    %c0_i32_1 = arith.constant 0 : i32
    return %arg1, %c0_i32, %c0_i32_0 : i32, i32, i32
  }
  func.func @transform_3(%arg0: i32, %arg1: i32) -> (i32, i32) {
    %c0_i32 = arith.constant 0 : i32
    %c0_i32_0 = arith.constant 0 : i32
    %c0_i32_1 = arith.constant 0 : i32
    return %c0_i32, %c0_i32_0 : i32, i32
  }
  func.func @transform_4(%arg0: i32, %arg1: i32) -> (i32, i32) {
    %c0_i32 = arith.constant 0 : i32
    %c0_i32_0 = arith.constant 0 : i32
    %c0_i32_1 = arith.constant 0 : i32
    return %c0_i32, %c0_i32_0 : i32, i32
  }
  func.func @transform_5(%arg0: i32, %arg1: i32) -> (i32, i32, i32, i32) {
    %c0_i32 = arith.constant 0 : i32
    %c0_i32_0 = arith.constant 0 : i32
    %c0_i32_1 = arith.constant 0 : i32
    return %arg0, %arg1, %c0_i32, %c0_i32_0 : i32, i32, i32, i32
  }
}

</mosaic_0001>

<llo_original>
// kernel: _forward_impl.2
$region0: #{_forward_impl.2}
  #allocation0 [shape = 'u32[]', space=smem, size = 0x4, offset = 0x4, fixed_abs, tag = 'smem constant byte address 0x4 - core index']
  #allocation1 [shape = 'u32[144,128]{1,0:T(1,128)}', space=vmem, size = 0x12000, scoped, tag = 'internal scratch']
  %s0 = inlined_call_operand.vmem [shape: f32[2,65,128], index: 0, kind: input, shape index: {}]
  %s1 = inlined_call_operand.vmem [shape: f32[32,65], index: 1, kind: input, shape index: {}]
  %s2 = inlined_call_operand.vmem [shape: f32[2,16,128], index: 2, kind: output, shape index: {}]
  %s3 = sld [smem:[#allocation0]]
  $region41: #{_forward_impl.2} parent=0
    _
  %s5 = ssub.s32 1, %s3
  %s6 = scalar_select 0, %s5, %s3
  loop: start=0, step=1, limit=4
  $region2: #{_forward_impl.2} parent=0 // loop_pre_header
    _
  $region3: #{_forward_impl.2} parent=0 // loop_header
    %s8 = sphi 0, %s12
    %p9 = scmp.ge.s32.totalorder %s8, 4
    %s18 = sphi 0, %s20
    %s21 = sphi 0, %s18
    %s22 = sphi 0, %s21
    %s38 = sphi 0, %s22
    %s42 = sphi 0, %s42
    %s44 = sphi 0, %s42
    %s45 = sphi 0, %s44
    %s59 = sphi 0, %s45
    %s65 = sphi 0, %s67
    %s68 = sphi 0, %s65
    %s69 = sphi 0, %s68
    %s85 = sphi 0, %s69
  $region4: #{_forward_impl.2} parent=0 // loop_header_branch
    %11 = sbr.rel (%p9) target = $region8
  $region5: #{_forward_impl.2} parent=0 // loop_body
    %s13 = ssub.s32 %s8, 1
    %s14 = ssub.s32 %s8, 2
    %s15 = sadd.s32 %s8, 1
    %s16 = ssub.s32 %s8, %s15
    %p17 = scmp.eq.s32.totalorder %s16, 0
    %s19 = sadd.s32 %s18, 1
    %s20 = scalar_select %p17, %s18, %s19
    %p23 = pneg %p17
    %p24 = scmp.eq.s32.totalorder %s8, 1
    %p25 = por %p23, %p24
    %p26 = scmp.ne.s32.totalorder %s18, %s21
    %p27 = scmp.eq.s32.totalorder %s8, 0
    %p28 = por %p26, %p27
    %p29 = scmp.ne.s32.totalorder %s18, %s21
    %p30 = scmp.eq.s32.totalorder %s13, 1
    %p31 = por %p29, %p30
    %p32 = scmp.ne.s32.totalorder %s21, %s22
    %p33 = scmp.eq.s32.totalorder %s13, 0
    %p34 = por %p32, %p33
    %p35 = scmp.ne.s32.totalorder %s21, %s22
    %p36 = scmp.eq.s32.totalorder %s14, 1
    %p37 = por %p35, %p36
    %p39 = scmp.ne.s32.totalorder %s22, %s38
    %p40 = scmp.eq.s32.totalorder %s14, 0
    %p41 = por %p39, %p40
    %s43 = sadd.s32 %s42, 1
    %p46 = scmp.eq.s32.totalorder %s8, 1
    %p47 = scmp.ne.s32.totalorder %s42, %s44
    %p48 = scmp.eq.s32.totalorder %s8, 0
    %p49 = por %p47, %p48
    %p50 = scmp.ne.s32.totalorder %s42, %s44
    %p51 = scmp.eq.s32.totalorder %s13, 1
    %p52 = por %p50, %p51
    %p53 = scmp.ne.s32.totalorder %s44, %s45
    %p54 = scmp.eq.s32.totalorder %s13, 0
    %p55 = por %p53, %p54
    %p56 = scmp.ne.s32.totalorder %s44, %s45
    %p57 = scmp.eq.s32.totalorder %s14, 1
    %p58 = por %p56, %p57
    %p60 = scmp.ne.s32.totalorder %s45, %s59
    %p61 = scmp.eq.s32.totalorder %s14, 0
    %p62 = por %p60, %p61
    %s63 = ssub.s32 %s8, %s15
    %p64 = scmp.eq.s32.totalorder %s63, 0
    %s66 = sadd.s32 %s65, 1
    %s67 = scalar_select %p64, %s65, %s66
    %p70 = pneg %p64
    %p71 = scmp.eq.s32.totalorder %s8, 1
    %p72 = por %p70, %p71
    %p73 = scmp.ne.s32.totalorder %s65, %s68
    %p74 = scmp.eq.s32.totalorder %s8, 0
    %p75 = por %p73, %p74
    %p76 = scmp.ne.s32.totalorder %s65, %s68
    %p77 = scmp.eq.s32.totalorder %s13, 1
    %p78 = por %p76, %p77
    %p79 = scmp.ne.s32.totalorder %s68, %s69
    %p80 = scmp.eq.s32.totalorder %s13, 0
    %p81 = por %p79, %p80
    %p82 = scmp.ne.s32.totalorder %s68, %s69
    %p83 = scmp.eq.s32.totalorder %s14, 1
    %p84 = por %p82, %p83
    %p86 = scmp.ne.s32.totalorder %s69, %s85
    %p87 = scmp.eq.s32.totalorder %s14, 0
    %p88 = por %p86, %p87
    %p89 = scmp.le.s32.totalorder 1, %s8
    %p90 = scmp.lt.s32.totalorder %s8, 3
    %p91 = pnand %p89, %p90
    %p92 = pneg %p91
    // Predicated region
    $region9: #{_forward_impl.2} parent=5 // pred_check
      _
    $region10: #{_forward_impl.2} parent=5 // pred_check_branch
      %94 = sbr.rel (%p91) target = $region12
    $region11: #{_forward_impl.2} parent=5 // pred_region
      %s95 = ssub.s32 %s8, 1
      // Predicated region
      $region13: #{_forward_impl.2} parent=11 // pred_check
        %p96 = pneg %p55
      $region14: #{_forward_impl.2} parent=11 // pred_check_branch
        %98 = sbr.rel (%p96) target = $region16
      $region15: #{_forward_impl.2} parent=11 // pred_region
        _
      $region16: #{_forward_impl.2} parent=11 // pred_fallthru
        _
    $region12: #{_forward_impl.2} parent=5 // pred_fallthru
      _
    %p99 = scmp.lt.s32.totalorder %s8, 2
    // Predicated region
    $region17: #{_forward_impl.2} parent=5 // pred_check
      %p100 = pneg %p99
    $region18: #{_forward_impl.2} parent=5 // pred_check_branch
      %102 = sbr.rel (%p100) target = $region20
    $region19: #{_forward_impl.2} parent=5 // pred_region
      // Predicated region
      $region21: #{_forward_impl.2} parent=19 // pred_check
        %p103 = pneg %p28
      $region22: #{_forward_impl.2} parent=19 // pred_check_branch
        %105 = sbr.rel (%p103) target = $region24
      $region23: #{_forward_impl.2} parent=19 // pred_region
        %p106 = scmp.lt.s32.totalorder %s8, 1
        %s107 = scalar_select %p106, %s8, 1
        %s108 = smul.addr %s107, 9
        %s109 = smul.addr %s108, 8
        %s110 = scalar_lea.vmem %s0, %s109
      $region24: #{_forward_impl.2} parent=19 // pred_fallthru
        _
    $region20: #{_forward_impl.2} parent=5 // pred_fallthru
      _
    %p111 = scmp.le.s32.totalorder 1, %s8
    %p112 = scmp.lt.s32.totalorder %s8, 3
    %p113 = pnand %p111, %p112
    %p114 = pneg %p113
    // Predicated region
    $region25: #{_forward_impl.2} parent=5 // pred_check
      _
    $region26: #{_forward_impl.2} parent=5 // pred_check_branch
      %116 = sbr.rel (%p113) target = $region28
    $region27: #{_forward_impl.2} parent=5 // pred_region
      %s117 = ssub.s32 %s8, 1
      %p118 = scmp.lt.s32.totalorder %s13, 1
      %s119 = scalar_select %p118, %s13, 1
      %s120 = smul.addr %s119, 9
      %s121 = smul.addr %s120, 8
      %s122 = scalar_lea.vmem %s0, %s121
      %p123 = pneg %p34
      %p124 = pneg %p31
      %p125 = pneg %p55
      %p126 = pneg %p52
      %p127 = pneg %p81
      %p128 = pneg %p78
      %p129 = scmp.lt.s32.totalorder %s13, 1
      %s130 = scalar_select %p129, %s13, 1
      %s131 = smul.addr %s130, 2
      %s132 = smul.addr %s131, 8
      %s133 = scalar_lea.vmem %s2, %s132
      %p134 = scmp.lt.s32.totalorder %s13, 1
      %s135 = scalar_select %p134, %s13, 1
      %s136 = smul.addr %s135, 9
      %s137 = smul.addr %s136, 8
      %s138 = scalar_lea.vmem %s0, %s137
      %p139 = scmp.lt.s32.totalorder %s13, 1
      %s140 = scalar_select %p139, %s13, 1
      %s141 = smul.addr %s140, 2
      %s142 = smul.addr %s141, 8
      %s143 = scalar_lea.vmem %s2, %s142
      %v144 = vld [vmem:[%s1] sm:$0xff]
      %v145 = vld [vmem:[%s1 + $0x8] sm:$0xff]
      %v146 = vld [vmem:[%s1 + $0x10] sm:$0xff]
      %v147 = vld [vmem:[%s1 + $0x18] sm:$0xff]
      %v148 = vld [vmem:[%s138] sm:$0xff]
      %v149 = vld [vmem:[%s138 + $0x8] sm:$0xff]
      %v150 = vld [vmem:[%s138 + $0x10] sm:$0xff]
      %v151 = vld [vmem:[%s138 + $0x18] sm:$0xff]
      %v152 = vld [vmem:[%s138 + $0x20] sm:$0xff]
      %v153 = vld [vmem:[%s138 + $0x28] sm:$0xff]
      %v154 = vld [vmem:[%s138 + $0x30] sm:$0xff]
      %v155 = vld [vmem:[%s138 + $0x38] sm:$0xff]
      %v156 = vld [vmem:[%s138 + $0x40] sm:$0x1]
      %vm157 = vcmask 531456
      %v159 = vsel %vm157, %v144, 0
      %v162 = vsel %vm157, %v145, 0
      %v165 = vsel %vm157, %v146, 0
      %v168 = vsel %vm157, %v147, 0
      %vm170 = vcmask 1040384
      %v172 = vsel %vm170, %v156, 0
      %174 = vmatprep.subr.mxu0 0.0
      %175 = vmatpush1.msra.mxu0 %v148
      %176 = vmatprep.subr.mxu0 0.0
      %177 = vmatpush1.msra.mxu0 %v149
      %178 = vmatprep.subr.mxu0 0.0
      %179 = vmatpush1.msra.mxu0 %v150
      %180 = vmatprep.subr.mxu0 0.0
      %181 = vmatpush1.msra.mxu0 %v151
      %182 = vmatprep.subr.mxu0 0.0
      %183 = vmatpush1.msra.mxu0 %v152
      %184 = vmatprep.subr.mxu0 0.0
      %185 = vmatpush1.msra.mxu0 %v153
      %186 = vmatprep.subr.mxu0 0.0
      %187 = vmatpush1.msra.mxu0 %v154
      %188 = vmatprep.subr.mxu0 0.0
      %189 = vmatpush1.msra.mxu0 %v155
      %190 = vmatprep.subr.mxu0 0.0
      %191 = vmatpush1.msra.mxu0 %v172
      %192 = vmatprep.subr.mxu0 0.0
      %193 = vmatpush1.msra.mxu0 0.0
      %194 = vmatprep.subr.mxu0 0.0
      %195 = vmatpush1.msra.mxu0 0.0
      %196 = vmatprep.subr.mxu0 0.0
      %197 = vmatpush1.msra.mxu0 0.0
      %198 = vmatprep.subr.mxu0 0.0
      %199 = vmatpush1.msra.mxu0 0.0
      %200 = vmatprep.subr.mxu0 0.0
      %201 = vmatpush1.msra.mxu0 0.0
      %202 = vmatprep.subr.mxu0 0.0
      %203 = vmatpush1.msra.mxu0 0.0
      %204 = vmatprep.subr.mxu0 0.0
      %205 = vmatpush1.msra.mxu0 0.0
      %206 = vmatprep.subr.mxu0 0.0
      %207 = vmatpush1.msra.mxu0 0.0
      %208 = vmatprep.subr.mxu0 0.0
      %209 = vmatpush1.msra.mxu0 0.0
      %210 = vmatprep.subr.mxu0 0.0
      %211 = vmatpush1.msra.mxu0 0.0
      %212 = vmatprep.subr.mxu0 0.0
      %213 = vmatpush1.msra.mxu0 0.0
      %214 = vmatprep.subr.mxu0 0.0
      %215 = vmatpush1.msra.mxu0 0.0
      %216 = vmatprep.subr.mxu0 0.0
      %217 = vmatpush1.msra.mxu0 0.0
      %218 = vmatprep.subr.mxu0 0.0
      %219 = vmatpush1.msra.mxu0 0.0
      %220 = vmatprep.subr.mxu0 0.0
      %221 = vmatpush1.msra.mxu0 0.0
      %222 = vmatprep.subr.mxu0 0.0
      %223 = vmatpush1.msra.mxu0 0.0
      %224 = vmatprep.subr.mxu0 0.0
      %225 = vmatpush1.msra.mxu0 0.0
      %226 = vmatprep.subr.mxu0 0.0
      %227 = vmatpush1.msra.mxu0 0.0
      %228 = vmatprep.subr.mxu0 0.0
      %229 = vmatpush1.msra.mxu0 0.0
      %230 = vmatprep.subr.mxu0 0.0
      %231 = vmatpush1.msra.mxu0 0.0
      %232 = vmatprep.subr.mxu0 0.0
      %233 = vmatpush1.msra.mxu0 0.0
      %234 = vmatprep.subr.mxu0 0.0
      %235 = vmatpush1.msra.mxu0 0.0
      %236 = vmatprep.subr.mxu0 0.0
      %237 = vmatpush1.msra.mxu0 0.0
      %238 = vmatprep.mubr.f32.mxu0 0.0
      %239 = vmatmul.mubr.f32.gmra.mrb[0].mxu0 %v159
      %v240 = vpop.f32.mrb[0].mxu0
      %v241 = vadd.f32 0.0, %v240
      %v242 = vpop.f32.mrb[0].mxu0
      %243 = vmatprep.mubr.f32.mxu0 0.0
      %244 = vmatmul.mubr.f32.gmra.mrb[0].mxu0 %v162
      %v245 = vpop.f32.mrb[0].mxu0
      %v246 = vadd.f32 0.0, %v245
      %v247 = vpop.f32.mrb[0].mxu0
      %248 = vmatprep.mubr.f32.mxu0 0.0
      %249 = vmatmul.mubr.f32.gmra.mrb[0].mxu0 %v165
      %v250 = vpop.f32.mrb[0].mxu0
      %v251 = vadd.f32 0.0, %v250
      %v252 = vpop.f32.mrb[0].mxu0
      %253 = vmatprep.mubr.f32.mxu0 0.0
      %254 = vmatmul.mubr.f32.gmra.mrb[0].mxu0 %v168
      %v255 = vpop.f32.mrb[0].mxu0
      %v256 = vadd.f32 0.0, %v255
      %v257 = vpop.f32.mrb[0].mxu0
      %258 = vdwg.mxu0
      %v259 = vmul.f32 %v241, %v241
      %v260 = vmul.f32 %v246, %v246
      %v261 = vmul.f32 %v251, %v251
      %v262 = vmul.f32 %v256, %v256
      %v263 = vadd.f32 %v259, %v261
      %v264 = vadd.f32 %v260, %v262
      %v265 = vrsqrt.pop %v263
      %v266 = vmul.f32 %v263, %v265
      %vm267 = vcmp.eq.f32.partialorder %v263, inf
      %v268 = vsel %vm267, %v263, %v266
      %vm269 = vcmp.eq.f32.partialorder %v263, 0.0
      %v270 = vand.u32 %v263, 2147483648
      %v271 = vsel %vm269, %v270, %v268
      %v272 = vrsqrt.pop %v264
      %v273 = vmul.f32 %v264, %v272
      %vm274 = vcmp.eq.f32.partialorder %v264, inf
      %v275 = vsel %vm274, %v264, %v273
      %vm276 = vcmp.eq.f32.partialorder %v264, 0.0
      %v277 = vand.u32 %v264, 2147483648
      %v278 = vsel %vm276, %v277, %v275
      %279 = vst [vmem:[%s143] sm:$0xff] %v271
      %280 = vst [vmem:[%s143 + $0x8] sm:$0xff] %v278
      %p281 = scmp.lt.s32.totalorder %s13, 1
      %s282 = scalar_select %p281, %s13, 1
      %s283 = smul.addr %s282, 2
      %s284 = smul.addr %s283, 8
      %s285 = scalar_lea.vmem %s2, %s284
      // Predicated region
      $region29: #{_forward_impl.2} parent=27 // pred_check
        %p286 = pneg %p78
      $region30: #{_forward_impl.2} parent=27 // pred_check_branch
        %288 = sbr.rel (%p286) target = $region32
      $region31: #{_forward_impl.2} parent=27 // pred_region
        _
      $region32: #{_forward_impl.2} parent=27 // pred_fallthru
        _
    $region28: #{_forward_impl.2} parent=5 // pred_fallthru
      _
    %p289 = scmp.le.s32.totalorder 2, %s8
    // Predicated region
    $region33: #{_forward_impl.2} parent=5 // pred_check
      %p290 = pneg %p289
    $region34: #{_forward_impl.2} parent=5 // pred_check_branch
      %292 = sbr.rel (%p290) target = $region36
    $region35: #{_forward_impl.2} parent=5 // pred_region
      %s293 = ssub.s32 %s8, 2
      // Predicated region
      $region37: #{_forward_impl.2} parent=35 // pred_check
        %p294 = pneg %p84
      $region38: #{_forward_impl.2} parent=35 // pred_check_branch
        %296 = sbr.rel (%p294) target = $region40
      $region39: #{_forward_impl.2} parent=35 // pred_region
        %p297 = scmp.lt.s32.totalorder %s14, 1
        %s298 = scalar_select %p297, %s14, 1
        %s299 = smul.addr %s298, 2
        %s300 = smul.addr %s299, 8
        %s301 = scalar_lea.vmem %s2, %s300
      $region40: #{_forward_impl.2} parent=35 // pred_fallthru
        _
    $region36: #{_forward_impl.2} parent=5 // pred_fallthru
      _
  $region6: #{_forward_impl.2} parent=0 // loop_footer
    %s12 = sadd.s32 1, %s8
  $region7: #{_forward_impl.2} parent=0 // loop_footer_branch
    %7 = sbr.rel target = $region3
  $region8: #{_forward_impl.2} parent=0 // loop_exit
    _

// kernel: _forward_impl.3
$region0: #{_forward_impl.3}
  #allocation0 [shape = 'u32[]', space=smem, size = 0x4, offset = 0x4, fixed_abs, tag = 'smem constant byte address 0x4 - core index']
  #allocation1 [shape = 'u32[144,128]{1,0:T(1,128)}', space=vmem, size = 0x12000, scoped, tag = 'internal scratch']
  %s0 = inlined_call_operand.vmem [shape: f32[2,16,160], index: 0, kind: input, shape index: {}]
  %s1 = inlined_call_operand.vmem [shape: f32[3,160,256], index: 1, kind: input, shape index: {}]
  %s2 = inlined_call_operand.vmem [shape: f32[3,64,16], index: 2, kind: input, shape index: {}]
  %s3 = inlined_call_operand.vmem [shape: f32[16,32], index: 3, kind: input, shape index: {}]
  %s4 = inlined_call_operand.vmem [shape: f32[128,32], index: 4, kind: input, shape index: {}]
  %s5 = inlined_call_operand.hbm [shape: f32[2,6,8,32], index: 5, kind: output, shape index: {}]
  %s6 = sld [smem:[#allocation0]]
  $region53: #{_forward_impl.3} parent=0
    _
  %s8 = ssub.s32 1, %s6
  %s9 = scalar_select 0, %s8, %s6
  $region1: #{_forward_impl.3} parent=0
    #allocation2 [shape = 'u8[16384]{0}', space=vmem, size = 0x4000, scoped, tag = 'output window, operand 0']
    #allocation3 [shape = 's32[2]{0}', space=sflag, size = 0x8, scoped, tag = 'scoped memory for _forward_impl.3']
    %10 = vsyncpa [#allocation3], 0
    %s11 = scalar_lea.sflag [#allocation3], 1
    %12 = vsyncpa %s11, 0
    loop: start=0, step=1, limit=8
    $region2: #{_forward_impl.3} parent=1 // loop_pre_header
      _
    $region3: #{_forward_impl.3} parent=1 // loop_header
      %s14 = sphi 0, %s18
      %p15 = scmp.ge.s32.totalorder %s14, 8
      %s21 = sphi 0, %s33
      %s22 = sphi 0, %s29
      %s23 = sphi 0, %s21
      %s24 = sphi 0, %s22
      %s25 = sphi 0, %s23
      %s26 = sphi 0, %s24
      %s36 = sphi 0, %s38
      %s39 = sphi 0, %s36
      %s40 = sphi 0, %s39
      %s56 = sphi 0, %s40
      %s62 = sphi 0, %s64
      %s65 = sphi 0, %s62
      %s66 = sphi 0, %s65
      %s82 = sphi 0, %s66
      %s88 = sphi 0, %s90
      %s91 = sphi 0, %s88
      %s92 = sphi 0, %s91
      %s108 = sphi 0, %s92
      %s112 = sphi 0, %s112
      %s114 = sphi 0, %s112
      %s115 = sphi 0, %s114
      %s129 = sphi 0, %s115
      %s133 = sphi 0, %s133
      %s135 = sphi 0, %s133
      %s136 = sphi 0, %s135
      %s150 = sphi 0, %s136
      %s158 = sphi 0, %s160
      %s161 = sphi 0, %s158
      %s162 = sphi 0, %s161
      %s178 = sphi 0, %s162
    $region4: #{_forward_impl.3} parent=1 // loop_header_branch
      %17 = sbr.rel (%p15) target = $region8
    $region5: #{_forward_impl.3} parent=1 // loop_body
      %s19 = ssub.s32 %s14, 1
      %s20 = ssub.s32 %s14, 2
      %s27 = sadd.s32 1, %s22
      %p28 = scmp.ge.s32.totalorder %s27, 3
      %s29 = scalar_select %p28, 0, %s27
      %s30 = sadd.s32 1, %s21
      %s31 = scalar_select %p28, %s30, %s21
      %p32 = scmp.ge.s32.totalorder %s31, 2
      %s33 = scalar_select %p32, 0, %s31
      %s34 = ssub.s32 %s21, %s33
      %p35 = scmp.eq.s32.totalorder %s34, 0
      %s37 = sadd.s32 %s36, 1
      %s38 = scalar_select %p35, %s36, %s37
      %p41 = pneg %p35
      %p42 = scmp.eq.s32.totalorder %s14, 5
      %p43 = por %p41, %p42
      %p44 = scmp.ne.s32.totalorder %s36, %s39
      %p45 = scmp.eq.s32.totalorder %s14, 0
      %p46 = por %p44, %p45
      %p47 = scmp.ne.s32.totalorder %s36, %s39
      %p48 = scmp.eq.s32.totalorder %s19, 5
      %p49 = por %p47, %p48
      %p50 = scmp.ne.s32.totalorder %s39, %s40
      %p51 = scmp.eq.s32.totalorder %s19, 0
      %p52 = por %p50, %p51
      %p53 = scmp.ne.s32.totalorder %s39, %s40
      %p54 = scmp.eq.s32.totalorder %s20, 5
      %p55 = por %p53, %p54
      %p57 = scmp.ne.s32.totalorder %s40, %s56
      %p58 = scmp.eq.s32.totalorder %s20, 0
      %p59 = por %p57, %p58
      %s60 = ssub.s32 %s22, %s29
      %p61 = scmp.eq.s32.totalorder %s60, 0
      %s63 = sadd.s32 %s62, 1
      %s64 = scalar_select %p61, %s62, %s63
      %p67 = pneg %p61
      %p68 = scmp.eq.s32.totalorder %s14, 5
      %p69 = por %p67, %p68
      %p70 = scmp.ne.s32.totalorder %s62, %s65
      %p71 = scmp.eq.s32.totalorder %s14, 0
      %p72 = por %p70, %p71
      %p73 = scmp.ne.s32.totalorder %s62, %s65
      %p74 = scmp.eq.s32.totalorder %s19, 5
      %p75 = por %p73, %p74
      %p76 = scmp.ne.s32.totalorder %s65, %s66
      %p77 = scmp.eq.s32.totalorder %s19, 0
      %p78 = por %p76, %p77
      %p79 = scmp.ne.s32.totalorder %s65, %s66
      %p80 = scmp.eq.s32.totalorder %s20, 5
      %p81 = por %p79, %p80
      %p83 = scmp.ne.s32.totalorder %s66, %s82
      %p84 = scmp.eq.s32.totalorder %s20, 0
      %p85 = por %p83, %p84
      %s86 = ssub.s32 %s22, %s29
      %p87 = scmp.eq.s32.totalorder %s86, 0
      %s89 = sadd.s32 %s88, 1
      %s90 = scalar_select %p87, %s88, %s89
      %p93 = pneg %p87
      %p94 = scmp.eq.s32.totalorder %s14, 5
      %p95 = por %p93, %p94
      %p96 = scmp.ne.s32.totalorder %s88, %s91
      %p97 = scmp.eq.s32.totalorder %s14, 0
      %p98 = por %p96, %p97
      %p99 = scmp.ne.s32.totalorder %s88, %s91
      %p100 = scmp.eq.s32.totalorder %s19, 5
      %p101 = por %p99, %p100
      %p102 = scmp.ne.s32.totalorder %s91, %s92
      %p103 = scmp.eq.s32.totalorder %s19, 0
      %p104 = por %p102, %p103
      %p105 = scmp.ne.s32.totalorder %s91, %s92
      %p106 = scmp.eq.s32.totalorder %s20, 5
      %p107 = por %p105, %p106
      %p109 = scmp.ne.s32.totalorder %s92, %s108
      %p110 = scmp.eq.s32.totalorder %s20, 0
      %p111 = por %p109, %p110
      %s113 = sadd.s32 %s112, 1
      %p116 = scmp.eq.s32.totalorder %s14, 5
      %p117 = scmp.ne.s32.totalorder %s112, %s114
      %p118 = scmp.eq.s32.totalorder %s14, 0
      %p119 = por %p117, %p118
      %p120 = scmp.ne.s32.totalorder %s112, %s114
      %p121 = scmp.eq.s32.totalorder %s19, 5
      %p122 = por %p120, %p121
      %p123 = scmp.ne.s32.totalorder %s114, %s115
      %p124 = scmp.eq.s32.totalorder %s19, 0
      %p125 = por %p123, %p124
      %p126 = scmp.ne.s32.totalorder %s114, %s115
      %p127 = scmp.eq.s32.totalorder %s20, 5
      %p128 = por %p126, %p127
      %p130 = scmp.ne.s32.totalorder %s115, %s129
      %p131 = scmp.eq.s32.totalorder %s20, 0
      %p132 = por %p130, %p131
      %s134 = sadd.s32 %s133, 1
      %p137 = scmp.eq.s32.totalorder %s14, 5
      %p138 = scmp.ne.s32.totalorder %s133, %s135
      %p139 = scmp.eq.s32.totalorder %s14, 0
      %p140 = por %p138, %p139
      %p141 = scmp.ne.s32.totalorder %s133, %s135
      %p142 = scmp.eq.s32.totalorder %s19, 5
      %p143 = por %p141, %p142
      %p144 = scmp.ne.s32.totalorder %s135, %s136
      %p145 = scmp.eq.s32.totalorder %s19, 0
      %p146 = por %p144, %p145
      %p147 = scmp.ne.s32.totalorder %s135, %s136
      %p148 = scmp.eq.s32.totalorder %s20, 5
      %p149 = por %p147, %p148
      %p151 = scmp.ne.s32.totalorder %s136, %s150
      %p152 = scmp.eq.s32.totalorder %s20, 0
      %p153 = por %p151, %p152
      %s154 = ssub.s32 %s21, %s33
      %s155 = ssub.s32 %s22, %s29
      %s156 = sor.u32 %s154, %s155
      %p157 = scmp.eq.s32.totalorder %s156, 0
      %s159 = sadd.s32 %s158, 1
      %s160 = scalar_select %p157, %s158, %s159
      %p163 = pneg %p157
      %p164 = scmp.eq.s32.totalorder %s14, 5
      %p165 = por %p163, %p164
      %p166 = scmp.ne.s32.totalorder %s158, %s161
      %p167 = scmp.eq.s32.totalorder %s14, 0
      %p168 = por %p166, %p167
      %p169 = scmp.ne.s32.totalorder %s158, %s161
      %p170 = scmp.eq.s32.totalorder %s19, 5
      %p171 = por %p169, %p170
      %p172 = scmp.ne.s32.totalorder %s161, %s162
      %p173 = scmp.eq.s32.totalorder %s19, 0
      %p174 = por %p172, %p173
      %p175 = scmp.ne.s32.totalorder %s161, %s162
      %p176 = scmp.eq.s32.totalorder %s20, 5
      %p177 = por %p175, %p176
      %p179 = scmp.ne.s32.totalorder %s162, %s178
      %p180 = scmp.eq.s32.totalorder %s20, 0
      %p181 = por %p179, %p180
      %p182 = scmp.le.s32.totalorder 1, %s14
      %p183 = scmp.lt.s32.totalorder %s14, 7
      %p184 = pnand %p182, %p183
      %p185 = pneg %p184
      // Predicated region
      $region9: #{_forward_impl.3} parent=5 // pred_check
        _
      $region10: #{_forward_impl.3} parent=5 // pred_check_branch
        %187 = sbr.rel (%p184) target = $region12
      $region11: #{_forward_impl.3} parent=5 // pred_region
        %s188 = ssub.s32 %s14, 1
        // Predicated region
        $region13: #{_forward_impl.3} parent=11 // pred_check
          %p189 = pneg %p125
        $region14: #{_forward_impl.3} parent=11 // pred_check_branch
          %191 = sbr.rel (%p189) target = $region16
        $region15: #{_forward_impl.3} parent=11 // pred_region
          _
        $region16: #{_forward_impl.3} parent=11 // pred_fallthru
          _
        // Predicated region
        $region17: #{_forward_impl.3} parent=11 // pred_check
          %p192 = pneg %p146
        $region18: #{_forward_impl.3} parent=11 // pred_check_branch
          %194 = sbr.rel (%p192) target = $region20
        $region19: #{_forward_impl.3} parent=11 // pred_region
          _
        $region20: #{_forward_impl.3} parent=11 // pred_fallthru
          _
      $region12: #{_forward_impl.3} parent=5 // pred_fallthru
        _
      %p195 = scmp.lt.s32.totalorder %s14, 6
      // Predicated region
      $region21: #{_forward_impl.3} parent=5 // pred_check
        %p196 = pneg %p195
      $region22: #{_forward_impl.3} parent=5 // pred_check_branch
        %198 = sbr.rel (%p196) target = $region24
      $region23: #{_forward_impl.3} parent=5 // pred_region
        // Predicated region
        $region25: #{_forward_impl.3} parent=23 // pred_check
          %p199 = pneg %p46
        $region26: #{_forward_impl.3} parent=23 // pred_check_branch
          %201 = sbr.rel (%p199) target = $region28
        $region27: #{_forward_impl.3} parent=23 // pred_region
          %p202 = scmp.lt.s32.totalorder %s21, 1
          %s203 = scalar_select %p202, %s21, 1
          %s204 = smul.addr %s203, 4
          %s205 = smul.addr %s204, 8
          %s206 = scalar_lea.vmem %s0, %s205
        $region28: #{_forward_impl.3} parent=23 // pred_fallthru
          _
        // Predicated region
        $region29: #{_forward_impl.3} parent=23 // pred_check
          %p207 = pneg %p72
        $region30: #{_forward_impl.3} parent=23 // pred_check_branch
          %209 = sbr.rel (%p207) target = $region32
        $region31: #{_forward_impl.3} parent=23 // pred_region
          %p210 = scmp.lt.s32.totalorder %s22, 2
          %s211 = scalar_select %p210, %s22, 2
          %s212 = smul.addr %s211, 40
          %s213 = smul.addr %s212, 8
          %s214 = scalar_lea.vmem %s1, %s213
        $region32: #{_forward_impl.3} parent=23 // pred_fallthru
          _
        // Predicated region
        $region33: #{_forward_impl.3} parent=23 // pred_check
          %p215 = pneg %p98
        $region34: #{_forward_impl.3} parent=23 // pred_check_branch
          %217 = sbr.rel (%p215) target = $region36
        $region35: #{_forward_impl.3} parent=23 // pred_region
          %p218 = scmp.lt.s32.totalorder %s22, 2
          %s219 = scalar_select %p218, %s22, 2
          %s220 = smul.addr %s219, 8
          %s221 = smul.addr %s220, 8
          %s222 = scalar_lea.vmem %s2, %s221
        $region36: #{_forward_impl.3} parent=23 // pred_fallthru
          _
      $region24: #{_forward_impl.3} parent=5 // pred_fallthru
        _
      %p223 = scmp.le.s32.totalorder 1, %s14
      %p224 = scmp.lt.s32.totalorder %s14, 7
      %p225 = pnand %p223, %p224
      %p226 = pneg %p225
      // Predicated region
      $region37: #{_forward_impl.3} parent=5 // pred_check
        _
      $region38: #{_forward_impl.3} parent=5 // pred_check_branch
        %228 = sbr.rel (%p225) target = $region40
      $region39: #{_forward_impl.3} parent=5 // pred_region
        %s229 = ssub.s32 %s14, 1
        %p230 = scmp.lt.s32.totalorder %s23, 1
        %s231 = scalar_select %p230, %s23, 1
        %s232 = smul.addr %s231, 4
        %s233 = smul.addr %s232, 8
        %s234 = scalar_lea.vmem %s0, %s233
        %p235 = pneg %p52
        %p236 = pneg %p49
        %p237 = scmp.lt.s32.totalorder %s24, 2
        %s238 = scalar_select %p237, %s24, 2
        %s239 = smul.addr %s238, 40
        %s240 = smul.addr %s239, 8
        %s241 = scalar_lea.vmem %s1, %s240
        %p242 = pneg %p78
        %p243 = pneg %p75
        %p244 = scmp.lt.s32.totalorder %s24, 2
        %s245 = scalar_select %p244, %s24, 2
        %s246 = smul.addr %s245, 8
        %s247 = smul.addr %s246, 8
        %s248 = scalar_lea.vmem %s2, %s247
        %p249 = pneg %p104
        %p250 = pneg %p101
        %p251 = pneg %p125
        %p252 = pneg %p122
        %p253 = pneg %p146
        %p254 = pneg %p143
        %p255 = pneg %p174
        %p256 = pneg %p171
        %s257 = sand.u32 %s161, 1
        %s258 = scalar_lea.sflag [#allocation3], %s257
        %s259 = sand.u32 %s161, 1
        %s260 = smul.addr %s259, 16
        %s261 = scalar_lea.vmem [#allocation2], %s260
        %p262 = scmp.lt.s32.totalorder %s23, 1
        %s263 = scalar_select %p262, %s23, 1
        %s264 = smul.addr %s263, 4
        %s265 = smul.addr %s264, 8
        %s266 = scalar_lea.vmem %s0, %s265
        %p267 = scmp.lt.s32.totalorder %s24, 2
        %s268 = scalar_select %p267, %s24, 2
        %s269 = smul.addr %s268, 40
        %s270 = smul.addr %s269, 8
        %s271 = scalar_lea.vmem %s1, %s270
        %p272 = scmp.lt.s32.totalorder %s24, 2
        %s273 = scalar_select %p272, %s24, 2
        %s274 = smul.addr %s273, 8
        %s275 = smul.addr %s274, 8
        %s276 = scalar_lea.vmem %s2, %s275
        %s277 = smul.u32 2, %s24
        %v278 = vld [vmem:[%s266] sm:$0xff]
        %v279 = vld [vmem:[%s266 + $0x8] sm:$0xff]
        %v280 = vld [vmem:[%s266 + $0x10] sm:$0xff]
        %v281 = vld [vmem:[%s266 + $0x18] sm:$0xff]
        %v282 = vld [vmem:[%s271] sm:$0xff]
        %v283 = vld [vmem:[%s271 + $0x8] sm:$0xff]
        %v284 = vld [vmem:[%s271 + $0x10] sm:$0xff]
        %v285 = vld [vmem:[%s271 + $0x18] sm:$0xff]
        %v286 = vld [vmem:[%s271 + $0x20] sm:$0xff]
        %v287 = vld [vmem:[%s271 + $0x28] sm:$0xff]
        %v288 = vld [vmem:[%s271 + $0x30] sm:$0xff]
        %v289 = vld [vmem:[%s271 + $0x38] sm:$0xff]
        %v290 = vld [vmem:[%s271 + $0x40] sm:$0xff]
        %v291 = vld [vmem:[%s271 + $0x48] sm:$0xff]
        %v292 = vld [vmem:[%s271 + $0x50] sm:$0xff]
        %v293 = vld [vmem:[%s271 + $0x58] sm:$0xff]
        %v294 = vld [vmem:[%s271 + $0x60] sm:$0xff]
        %v295 = vld [vmem:[%s271 + $0x68] sm:$0xff]
        %v296 = vld [vmem:[%s271 + $0x70] sm:$0xff]
        %v297 = vld [vmem:[%s271 + $0x78] sm:$0xff]
        %v298 = vld [vmem:[%s271 + $0x80] sm:$0xff]
        %v299 = vld [vmem:[%s271 + $0x88] sm:$0xff]
        %v300 = vld [vmem:[%s271 + $0x90] sm:$0xff]
        %v301 = vld [vmem:[%s271 + $0x98] sm:$0xff]
        %v302 = vld [vmem:[%s271 + $0xa0] sm:$0xff]
        %v303 = vld [vmem:[%s271 + $0xa8] sm:$0xff]
        %v304 = vld [vmem:[%s271 + $0xb0] sm:$0xff]
        %v305 = vld [vmem:[%s271 + $0xb8] sm:$0xff]
        %v306 = vld [vmem:[%s271 + $0xc0] sm:$0xff]
        %v307 = vld [vmem:[%s271 + $0xc8] sm:$0xff]
        %v308 = vld [vmem:[%s271 + $0xd0] sm:$0xff]
        %v309 = vld [vmem:[%s271 + $0xd8] sm:$0xff]
        %v310 = vld [vmem:[%s271 + $0xe0] sm:$0xff]
        %v311 = vld [vmem:[%s271 + $0xe8] sm:$0xff]
        %v312 = vld [vmem:[%s271 + $0xf0] sm:$0xff]
        %v313 = vld [vmem:[%s271 + $0xf8] sm:$0xff]
        %v314 = vld [vmem:[%s271 + $0x100] sm:$0xff]
        %v315 = vld [vmem:[%s271 + $0x108] sm:$0xff]
        %v316 = vld [vmem:[%s271 + $0x110] sm:$0xff]
        %v317 = vld [vmem:[%s271 + $0x118] sm:$0xff]
        %v318 = vld [vmem:[%s271 + $0x120] sm:$0xff]
        %v319 = vld [vmem:[%s271 + $0x128] sm:$0xff]
        %v320 = vld [vmem:[%s271 + $0x130] sm:$0xff]
        %v321 = vld [vmem:[%s271 + $0x138] sm:$0xff]
        %vm322 = vcmask 261120
        %v324 = vsel %vm322, %v279, 0
        %v327 = vsel %vm322, %v281, 0
        %329 = vmatprep.subr.mxu0 %v283
        %330 = vmatpush1.msra.mxu0 %v282
        %331 = vmatprep.subr.mxu0 %v285
        %332 = vmatpush1.msra.mxu0 %v284
        %333 = vmatprep.subr.mxu0 %v287
        %334 = vmatpush1.msra.mxu0 %v286
        %335 = vmatprep.subr.mxu0 %v289
        %336 = vmatpush1.msra.mxu0 %v288
        %337 = vmatprep.subr.mxu0 %v291
        %338 = vmatpush1.msra.mxu0 %v290
        %339 = vmatprep.subr.mxu0 %v293
        %340 = vmatpush1.msra.mxu0 %v292
        %341 = vmatprep.subr.mxu0 %v295
        %342 = vmatpush1.msra.mxu0 %v294
        %343 = vmatprep.subr.mxu0 %v297
        %344 = vmatpush1.msra.mxu0 %v296
        %345 = vmatprep.subr.mxu0 %v299
        %346 = vmatpush1.msra.mxu0 %v298
        %347 = vmatprep.subr.mxu0 %v301
        %348 = vmatpush1.msra.mxu0 %v300
        %349 = vmatprep.subr.mxu0 %v303
        %350 = vmatpush1.msra.mxu0 %v302
        %351 = vmatprep.subr.mxu0 %v305
        %352 = vmatpush1.msra.mxu0 %v304
        %353 = vmatprep.subr.mxu0 %v307
        %354 = vmatpush1.msra.mxu0 %v306
        %355 = vmatprep.subr.mxu0 %v309
        %356 = vmatpush1.msra.mxu0 %v308
        %357 = vmatprep.subr.mxu0 %v311
        %358 = vmatpush1.msra.mxu0 %v310
        %359 = vmatprep.subr.mxu0 %v313
        %360 = vmatpush1.msra.mxu0 %v312
        %361 = vmatprep.subr.mxu0 %v315
        %362 = vmatpush1.msra.mxu0 %v314
        %363 = vmatprep.subr.mxu0 %v317
        %364 = vmatpush1.msra.mxu0 %v316
        %365 = vmatprep.subr.mxu0 %v319
        %366 = vmatpush1.msra.mxu0 %v318
        %367 = vmatprep.subr.mxu0 %v321
        %368 = vmatpush1.msra.mxu0 %v320
        %369 = vmatprep.subr.mxu0 0.0
        %370 = vmatpush1.msra.mxu0 0.0
        %371 = vmatprep.subr.mxu0 0.0
        %372 = vmatpush1.msra.mxu0 0.0
        %373 = vmatprep.subr.mxu0 0.0
        %374 = vmatpush1.msra.mxu0 0.0
        %375 = vmatprep.subr.mxu0 0.0
        %376 = vmatpush1.msra.mxu0 0.0
        %377 = vmatprep.subr.mxu0 0.0
        %378 = vmatpush1.msra.mxu0 0.0
        %379 = vmatprep.subr.mxu0 0.0
        %380 = vmatpush1.msra.mxu0 0.0
        %381 = vmatprep.subr.mxu0 0.0
        %382 = vmatpush1.msra.mxu0 0.0
        %383 = vmatprep.subr.mxu0 0.0
        %384 = vmatpush1.msra.mxu0 0.0
        %385 = vmatprep.subr.mxu0 0.0
        %386 = vmatpush1.msra.mxu0 0.0
        %387 = vmatprep.subr.mxu0 0.0
        %388 = vmatpush1.msra.mxu0 0.0
        %389 = vmatprep.subr.mxu0 0.0
        %390 = vmatpush1.msra.mxu0 0.0
        %391 = vmatprep.subr.mxu0 0.0
        %392 = vmatpush1.msra.mxu0 0.0
        %393 = vmatprep.mubr.f32.mxu0 %v324
        %394 = vmatmul.mubr.f32.gmra.mrb[0].mxu0 %v278
        %v395 = vpop.f32.mrb[0].mxu0
        %v396 = vadd.f32 0.0, %v395
        %v397 = vpop.f32.mrb[0].mxu0
        %v398 = vadd.f32 0.0, %v397
        %399 = vmatprep.mubr.f32.mxu0 %v327
        %400 = vmatmul.mubr.f32.gmra.mrb[0].mxu0 %v280
        %v401 = vpop.f32.mrb[0].mxu0
        %v402 = vadd.f32 0.0, %v401
        %v403 = vpop.f32.mrb[0].mxu0
        %v404 = vadd.f32 0.0, %v403
        %405 = vdwg.mxu0
        %v406 = vmul.f32 %v396, %v396
        %v407 = vmul.f32 %v402, %v402
        %v408 = vmul.f32 %v398, %v398
        %v409 = vmul.f32 %v404, %v404
        %v410 = vadd.f32 %v406, %v408
        %v411 = vadd.f32 %v407, %v409
        %v412 = vrsqrt.pop %v410
        %v413 = vmul.f32 %v410, %v412
        %vm414 = vcmp.eq.f32.partialorder %v410, inf
        %v415 = vsel %vm414, %v410, %v413
        %vm416 = vcmp.eq.f32.partialorder %v410, 0.0
        %v417 = vand.u32 %v410, 2147483648
        %v418 = vsel %vm416, %v417, %v415
        %v419 = vrsqrt.pop %v411
        %v420 = vmul.f32 %v411, %v419
        %vm421 = vcmp.eq.f32.partialorder %v411, inf
        %v422 = vsel %vm421, %v411, %v420
        %vm423 = vcmp.eq.f32.partialorder %v411, 0.0
        %v424 = vand.u32 %v411, 2147483648
        %v425 = vsel %vm423, %v424, %v422
        %v426 = vld [vmem:[%s276] sm:$0xff]
        %v427 = vld [vmem:[%s276 + $0x8] sm:$0xff]
        %v428 = vld [vmem:[%s276 + $0x10] sm:$0xff]
        %v429 = vld [vmem:[%s276 + $0x18] sm:$0xff]
        %v430 = vld [vmem:[%s276 + $0x20] sm:$0xff]
        %v431 = vld [vmem:[%s276 + $0x28] sm:$0xff]
        %v432 = vld [vmem:[%s276 + $0x30] sm:$0xff]
        %v433 = vld [vmem:[%s276 + $0x38] sm:$0xff]
        %vm434 = vcmask 130048
        %v436 = vsel %vm434, %v426, 0
        %v439 = vsel %vm434, %v427, 0
        %v442 = vsel %vm434, %v428, 0
        %v445 = vsel %vm434, %v429, 0
        %v448 = vsel %vm434, %v430, 0
        %v451 = vsel %vm434, %v431, 0
        %v454 = vsel %vm434, %v432, 0
        %v457 = vsel %vm434, %v433, 0
        %459 = vmatprep.subr.mxu0 0.0
        %460 = vmatpush1.msra.mxu0 %v418
        %461 = vmatprep.subr.mxu0 0.0
        %462 = vmatpush1.msra.mxu0 %v425
        %463 = vmatprep.subr.mxu0 0.0
        %464 = vmatpush1.msra.mxu0 0.0
        %465 = vmatprep.subr.mxu0 0.0
        %466 = vmatpush1.msra.mxu0 0.0
        %467 = vmatprep.subr.mxu0 0.0
        %468 = vmatpush1.msra.mxu0 0.0
        %469 = vmatprep.subr.mxu0 0.0
        %470 = vmatpush1.msra.mxu0 0.0
        %471 = vmatprep.subr.mxu0 0.0
        %472 = vmatpush1.msra.mxu0 0.0
        %473 = vmatprep.subr.mxu0 0.0
        %474 = vmatpush1.msra.mxu0 0.0
        %475 = vmatprep.subr.mxu0 0.0
        %476 = vmatpush1.msra.mxu0 0.0
        %477 = vmatprep.subr.mxu0 0.0
        %478 = vmatpush1.msra.mxu0 0.0
        %479 = vmatprep.subr.mxu0 0.0
        %480 = vmatpush1.msra.mxu0 0.0
        %481 = vmatprep.subr.mxu0 0.0
        %482 = vmatpush1.msra.mxu0 0.0
        %483 = vmatprep.subr.mxu0 0.0
        %484 = vmatpush1.msra.mxu0 0.0
        %485 = vmatprep.subr.mxu0 0.0
        %486 = vmatpush1.msra.mxu0 0.0
        %487 = vmatprep.subr.mxu0 0.0
        %488 = vmatpush1.msra.mxu0 0.0
        %489 = vmatprep.subr.mxu0 0.0
        %490 = vmatpush1.msra.mxu0 0.0
        %491 = vmatprep.subr.mxu0 0.0
        %492 = vmatpush1.msra.mxu0 0.0
        %493 = vmatprep.subr.mxu0 0.0
        %494 = vmatpush1.msra.mxu0 0.0
        %495 = vmatprep.subr.mxu0 0.0
        %496 = vmatpush1.msra.mxu0 0.0
        %497 = vmatprep.subr.mxu0 0.0
        %498 = vmatpush1.msra.mxu0 0.0
        %499 = vmatprep.subr.mxu0 0.0
        %500 = vmatpush1.msra.mxu0 0.0
        %501 = vmatprep.subr.mxu0 0.0
        %502 = vmatpush1.msra.mxu0 0.0
        %503 = vmatprep.subr.mxu0 0.0
        %504 = vmatpush1.msra.mxu0 0.0
        %505 = vmatprep.subr.mxu0 0.0
        %506 = vmatpush1.msra.mxu0 0.0
        %507 = vmatprep.subr.mxu0 0.0
        %508 = vmatpush1.msra.mxu0 0.0
        %509 = vmatprep.subr.mxu0 0.0
        %510 = vmatpush1.msra.mxu0 0.0
        %511 = vmatprep.subr.mxu0 0.0
        %512 = vmatpush1.msra.mxu0 0.0
        %513 = vmatprep.subr.mxu0 0.0
        %514 = vmatpush1.msra.mxu0 0.0
        %515 = vmatprep.subr.mxu0 0.0
        %516 = vmatpush1.msra.mxu0 0.0
        %517 = vmatprep.subr.mxu0 0.0
        %518 = vmatpush1.msra.mxu0 0.0
        %519 = vmatprep.subr.mxu0 0.0
        %520 = vmatpush1.msra.mxu0 0.0
        %521 = vmatprep.subr.mxu0 0.0
        %522 = vmatpush1.msra.mxu0 0.0
        %523 = vmatprep.mubr.f32.mxu0 0.0
        %524 = vmatmul.mubr.f32.gmra.mrb[0].mxu0 %v436
        %v525 = vpop.f32.mrb[0].mxu0
        %v526 = vadd.f32 0.0, %v525
        %v527 = vpop.f32.mrb[0].mxu0
        %528 = vmatprep.mubr.f32.mxu0 0.0
        %529 = vmatmul.mubr.f32.gmra.mrb[0].mxu0 %v439
        %v530 = vpop.f32.mrb[0].mxu0
        %v531 = vadd.f32 0.0, %v530
        %v532 = vpop.f32.mrb[0].mxu0
        %533 = vmatprep.mubr.f32.mxu0 0.0
        %534 = vmatmul.mubr.f32.gmra.mrb[0].mxu0 %v442
        %v535 = vpop.f32.mrb[0].mxu0
        %v536 = vadd.f32 0.0, %v535
        %v537 = vpop.f32.mrb[0].mxu0
        %538 = vmatprep.mubr.f32.mxu0 0.0
        %539 = vmatmul.mubr.f32.gmra.mrb[0].mxu0 %v445
        %v540 = vpop.f32.mrb[0].mxu0
        %v541 = vadd.f32 0.0, %v540
        %v542 = vpop.f32.mrb[0].mxu0
        %543 = vmatprep.mubr.f32.mxu0 0.0
        %544 = vmatmul.mubr.f32.gmra.mrb[0].mxu0 %v448
        %v545 = vpop.f32.mrb[0].mxu0
        %v546 = vadd.f32 0.0, %v545
        %v547 = vpop.f32.mrb[0].mxu0
        %548 = vmatprep.mubr.f32.mxu0 0.0
        %549 = vmatmul.mubr.f32.gmra.mrb[0].mxu0 %v451
        %v550 = vpop.f32.mrb[0].mxu0
        %v551 = vadd.f32 0.0, %v550
        %v552 = vpop.f32.mrb[0].mxu0
        %553 = vmatprep.mubr.f32.mxu0 0.0
        %554 = vmatmul.mubr.f32.gmra.mrb[0].mxu0 %v454
        %v555 = vpop.f32.mrb[0].mxu0
        %v556 = vadd.f32 0.0, %v555
        %v557 = vpop.f32.mrb[0].mxu0
        %558 = vmatprep.mubr.f32.mxu0 0.0
        %559 = vmatmul.mubr.f32.gmra.mrb[0].mxu0 %v457
        %v560 = vpop.f32.mrb[0].mxu0
        %v561 = vadd.f32 0.0, %v560
        %v562 = vpop.f32.mrb[0].mxu0
        %563 = vdwg.mxu0
        %v564 = vmul.f32 %v526, %v526
        %v565 = vmul.f32 %v531, %v531
        %v566 = vmul.f32 %v536, %v536
        %v567 = vmul.f32 %v541, %v541
        %v568 = vmul.f32 %v546, %v546
        %v569 = vmul.f32 %v551, %v551
        %v570 = vmul.f32 %v556, %v556
        %v571 = vmul.f32 %v561, %v561
        %v572 = vadd.f32 %v564, %v568
        %v573 = vadd.f32 %v565, %v569
        %v574 = vadd.f32 %v566, %v570
        %v575 = vadd.f32 %v567, %v571
        %v576 = vrsqrt.pop %v572
        %v577 = vmul.f32 %v572, %v576
        %vm578 = vcmp.eq.f32.partialorder %v572, inf
        %v579 = vsel %vm578, %v572, %v577
        %vm580 = vcmp.eq.f32.partialorder %v572, 0.0
        %v581 = vand.u32 %v572, 2147483648
        %v582 = vsel %vm580, %v581, %v579
        %v583 = vrsqrt.pop %v573
        %v584 = vmul.f32 %v573, %v583
        %vm585 = vcmp.eq.f32.partialorder %v573, inf
        %v586 = vsel %vm585, %v573, %v584
        %vm587 = vcmp.eq.f32.partialorder %v573, 0.0
        %v588 = vand.u32 %v573, 2147483648
        %v589 = vsel %vm587, %v588, %v586
        %v590 = vrsqrt.pop %v574
        %v591 = vmul.f32 %v574, %v590
        %vm592 = vcmp.eq.f32.partialorder %v574, inf
        %v593 = vsel %vm592, %v574, %v591
        %vm594 = vcmp.eq.f32.partialorder %v574, 0.0
        %v595 = vand.u32 %v574, 2147483648
        %v596 = vsel %vm594, %v595, %v593
        %v597 = vrsqrt.pop %v575
        %v598 = vmul.f32 %v575, %v597
        %vm599 = vcmp.eq.f32.partialorder %v575, inf
        %v600 = vsel %vm599, %v575, %v598
        %vm601 = vcmp.eq.f32.partialorder %v575, 0.0
        %v602 = vand.u32 %v575, 2147483648
        %v603 = vsel %vm601, %v602, %v600
        %v604 = vld [vmem:[%s3] sm:$0xff]
        %v605 = vld [vmem:[%s3 + $0x8] sm:$0xff]
        %v607 = vsel %vm322, %v604, 0
        %v610 = vsel %vm322, %v605, 0
        %612 = vmatprep.subr.mxu0 0.0
        %613 = vmatpush1.msra.mxu0 %v582
        %614 = vmatprep.subr.mxu0 0.0
        %615 = vmatpush1.msra.mxu0 %v589
        %616 = vmatprep.subr.mxu0 0.0
        %617 = vmatpush1.msra.mxu0 %v596
        %618 = vmatprep.subr.mxu0 0.0
        %619 = vmatpush1.msra.mxu0 %v603
        %620 = vmatprep.subr.mxu0 0.0
        %621 = vmatpush1.msra.mxu0 0.0
        %622 = vmatprep.subr.mxu0 0.0
        %623 = vmatpush1.msra.mxu0 0.0
        %624 = vmatprep.subr.mxu0 0.0
        %625 = vmatpush1.msra.mxu0 0.0
        %626 = vmatprep.subr.mxu0 0.0
        %627 = vmatpush1.msra.mxu0 0.0
        %628 = vmatprep.subr.mxu0 0.0
        %629 = vmatpush1.msra.mxu0 0.0
        %630 = vmatprep.subr.mxu0 0.0
        %631 = vmatpush1.msra.mxu0 0.0
        %632 = vmatprep.subr.mxu0 0.0
        %633 = vmatpush1.msra.mxu0 0.0
        %634 = vmatprep.subr.mxu0 0.0
        %635 = vmatpush1.msra.mxu0 0.0
        %636 = vmatprep.subr.mxu0 0.0
        %637 = vmatpush1.msra.mxu0 0.0
        %638 = vmatprep.subr.mxu0 0.0
        %639 = vmatpush1.msra.mxu0 0.0
        %640 = vmatprep.subr.mxu0 0.0
        %641 = vmatpush1.msra.mxu0 0.0
        %642 = vmatprep.subr.mxu0 0.0
        %643 = vmatpush1.msra.mxu0 0.0
        %644 = vmatprep.subr.mxu0 0.0
        %645 = vmatpush1.msra.mxu0 0.0
        %646 = vmatprep.subr.mxu0 0.0
        %647 = vmatpush1.msra.mxu0 0.0
        %648 = vmatprep.subr.mxu0 0.0
        %649 = vmatpush1.msra.mxu0 0.0
        %650 = vmatprep.subr.mxu0 0.0
        %651 = vmatpush1.msra.mxu0 0.0
        %652 = vmatprep.subr.mxu0 0.0
        %653 = vmatpush1.msra.mxu0 0.0
        %654 = vmatprep.subr.mxu0 0.0
        %655 = vmatpush1.msra.mxu0 0.0
        %656 = vmatprep.subr.mxu0 0.0
        %657 = vmatpush1.msra.mxu0 0.0
        %658 = vmatprep.subr.mxu0 0.0
        %659 = vmatpush1.msra.mxu0 0.0
        %660 = vmatprep.subr.mxu0 0.0
        %661 = vmatpush1.msra.mxu0 0.0
        %662 = vmatprep.subr.mxu0 0.0
        %663 = vmatpush1.msra.mxu0 0.0
        %664 = vmatprep.subr.mxu0 0.0
        %665 = vmatpush1.msra.mxu0 0.0
        %666 = vmatprep.subr.mxu0 0.0
        %667 = vmatpush1.msra.mxu0 0.0
        %668 = vmatprep.subr.mxu0 0.0
        %669 = vmatpush1.msra.mxu0 0.0
        %670 = vmatprep.subr.mxu0 0.0
        %671 = vmatpush1.msra.mxu0 0.0
        %672 = vmatprep.subr.mxu0 0.0
        %673 = vmatpush1.msra.mxu0 0.0
        %674 = vmatprep.subr.mxu0 0.0
        %675 = vmatpush1.msra.mxu0 0.0
        %676 = vmatprep.mubr.f32.mxu0 0.0
        %677 = vmatmul.mubr.f32.gmra.mrb[0].mxu0 %v607
        %v678 = vpop.f32.mrb[0].mxu0
        %v679 = vadd.f32 0.0, %v678
        %v680 = vpop.f32.mrb[0].mxu0
        %681 = vmatprep.mubr.f32.mxu0 0.0
        %682 = vmatmul.mubr.f32.gmra.mrb[0].mxu0 %v610
        %v683 = vpop.f32.mrb[0].mxu0
        %v684 = vadd.f32 0.0, %v683
        %v685 = vpop.f32.mrb[0].mxu0
        %686 = vdwg.mxu0
        %v687 = vld [vmem:[%s4] sm:$0xff]
        %v688 = vld [vmem:[%s4 + $0x8] sm:$0xff]
        %v689 = vld [vmem:[%s4 + $0x10] sm:$0xff]
        %v690 = vld [vmem:[%s4 + $0x18] sm:$0xff]
        %v691 = vld [vmem:[%s4 + $0x20] sm:$0xff]
        %v692 = vld [vmem:[%s4 + $0x28] sm:$0xff]
        %v693 = vld [vmem:[%s4 + $0x30] sm:$0xff]
        %v694 = vld [vmem:[%s4 + $0x38] sm:$0xff]
        %v695 = vld [vmem:[%s4 + $0x40] sm:$0xff]
        %v696 = vld [vmem:[%s4 + $0x48] sm:$0xff]
        %v697 = vld [vmem:[%s4 + $0x50] sm:$0xff]
        %v698 = vld [vmem:[%s4 + $0x58] sm:$0xff]
        %v699 = vld [vmem:[%s4 + $0x60] sm:$0xff]
        %v700 = vld [vmem:[%s4 + $0x68] sm:$0xff]
        %v701 = vld [vmem:[%s4 + $0x70] sm:$0xff]
        %v702 = vld [vmem:[%s4 + $0x78] sm:$0xff]
        %703 = vmatprep.subr.mxu0 0.0
        %704 = vmatpush1.msra.mxu0 %v687
        %705 = vmatprep.subr.mxu0 0.0
        %706 = vmatpush1.msra.mxu0 %v688
        %707 = vmatprep.subr.mxu0 0.0
        %708 = vmatpush1.msra.mxu0 %v689
        %709 = vmatprep.subr.mxu0 0.0
        %710 = vmatpush1.msra.mxu0 %v690
        %711 = vmatprep.subr.mxu0 0.0
        %712 = vmatpush1.msra.mxu0 %v691
        %713 = vmatprep.subr.mxu0 0.0
        %714 = vmatpush1.msra.mxu0 %v692
        %715 = vmatprep.subr.mxu0 0.0
        %716 = vmatpush1.msra.mxu0 %v693
        %717 = vmatprep.subr.mxu0 0.0
        %718 = vmatpush1.msra.mxu0 %v694
        %719 = vmatprep.subr.mxu0 0.0
        %720 = vmatpush1.msra.mxu0 %v695
        %721 = vmatprep.subr.mxu0 0.0
        %722 = vmatpush1.msra.mxu0 %v696
        %723 = vmatprep.subr.mxu0 0.0
        %724 = vmatpush1.msra.mxu0 %v697
        %725 = vmatprep.subr.mxu0 0.0
        %726 = vmatpush1.msra.mxu0 %v698
        %727 = vmatprep.subr.mxu0 0.0
        %728 = vmatpush1.msra.mxu0 %v699
        %729 = vmatprep.subr.mxu0 0.0
        %730 = vmatpush1.msra.mxu0 %v700
        %731 = vmatprep.subr.mxu0 0.0
        %732 = vmatpush1.msra.mxu0 %v701
        %733 = vmatprep.subr.mxu0 0.0
        %734 = vmatpush1.msra.mxu0 %v702
        %735 = vmatprep.subr.mxu0 0.0
        %736 = vmatpush1.msra.mxu0 0.0
        %737 = vmatprep.subr.mxu0 0.0
        %738 = vmatpush1.msra.mxu0 0.0
        %739 = vmatprep.subr.mxu0 0.0
        %740 = vmatpush1.msra.mxu0 0.0
        %741 = vmatprep.subr.mxu0 0.0
        %742 = vmatpush1.msra.mxu0 0.0
        %743 = vmatprep.subr.mxu0 0.0
        %744 = vmatpush1.msra.mxu0 0.0
        %745 = vmatprep.subr.mxu0 0.0
        %746 = vmatpush1.msra.mxu0 0.0
        %747 = vmatprep.subr.mxu0 0.0
        %748 = vmatpush1.msra.mxu0 0.0
        %749 = vmatprep.subr.mxu0 0.0
        %750 = vmatpush1.msra.mxu0 0.0
        %751 = vmatprep.subr.mxu0 0.0
        %752 = vmatpush1.msra.mxu0 0.0
        %753 = vmatprep.subr.mxu0 0.0
        %754 = vmatpush1.msra.mxu0 0.0
        %755 = vmatprep.subr.mxu0 0.0
        %756 = vmatpush1.msra.mxu0 0.0
        %757 = vmatprep.subr.mxu0 0.0
        %758 = vmatpush1.msra.mxu0 0.0
        %759 = vmatprep.subr.mxu0 0.0
        %760 = vmatpush1.msra.mxu0 0.0
        %761 = vmatprep.subr.mxu0 0.0
        %762 = vmatpush1.msra.mxu0 0.0
        %763 = vmatprep.subr.mxu0 0.0
        %764 = vmatpush1.msra.mxu0 0.0
        %765 = vmatprep.subr.mxu0 0.0
        %766 = vmatpush1.msra.mxu0 0.0
        %767 = vmatprep.mubr.f32.mxu0 0.0
        %768 = vmatmul.mubr.f32.gmra.mrb[0].mxu0 %v679
        %v769 = vpop.f32.mrb[0].mxu0
        %v770 = vadd.f32 0.0, %v769
        %v771 = vpop.f32.mrb[0].mxu0
        %772 = vmatprep.mubr.f32.mxu0 0.0
        %773 = vmatmul.mubr.f32.gmra.mrb[0].mxu0 %v684
        %v774 = vpop.f32.mrb[0].mxu0
        %v775 = vadd.f32 0.0, %v774
        %v776 = vpop.f32.mrb[0].mxu0
        %777 = vdwg.mxu0
        %778 = vst.msk [vmem:[%s261] sm:$0xff] %vm322, %v770
        %779 = vst.msk [vmem:[%s261 + $0x8] sm:$0xff] %vm322, %v775
        %s780 = sand.u32 %s161, 1
        %s781 = scalar_lea.sflag [#allocation3], %s780
        %s782 = sand.u32 %s161, 1
        %s783 = smul.addr %s782, 16
        %s784 = scalar_lea.vmem [#allocation2], %s783
        // Predicated region
        $region41: #{_forward_impl.3} parent=39 // pred_check
          %p785 = pneg %p171
        $region42: #{_forward_impl.3} parent=39 // pred_check_branch
          %787 = sbr.rel (%p785) target = $region44
        $region43: #{_forward_impl.3} parent=39 // pred_region
          %s788 = smul.u32 2, %s24
          %s790 = ssub.s32 256, 256
          %791 = vsyncadd %s781, %s790
          %s792 = smul.addr %s23, 6
          %s793 = sadd.s32 %s788, %s792
          %s794 = smul.addr %s793, 128
          %s795 = scalar_lea.hbm %s5, %s794
          %s796 = sshll.u32 %s784, 4
          %s797 = int_to_ptr.vmem [resolvable:$true] %s796
          %802 = dma.vmem_to_hbm [thread:$0]  %s797, 256, %s795, %s781, 128, 128, 8
        $region44: #{_forward_impl.3} parent=39 // pred_fallthru
          _
      $region40: #{_forward_impl.3} parent=5 // pred_fallthru
        _
      %p803 = scmp.le.s32.totalorder 2, %s14
      // Predicated region
      $region45: #{_forward_impl.3} parent=5 // pred_check
        %p804 = pneg %p803
      $region46: #{_forward_impl.3} parent=5 // pred_check_branch
        %806 = sbr.rel (%p804) target = $region48
      $region47: #{_forward_impl.3} parent=5 // pred_region
        %s807 = ssub.s32 %s14, 2
        // Predicated region
        $region49: #{_forward_impl.3} parent=47 // pred_check
          %p808 = pneg %p177
        $region50: #{_forward_impl.3} parent=47 // pred_check_branch
          %810 = sbr.rel (%p808) target = $region52
        $region51: #{_forward_impl.3} parent=47 // pred_region
          %s811 = sand.u32 %s162, 1
          %s812 = scalar_lea.sflag [#allocation3], %s811
          %s813 = sand.u32 %s162, 1
          %s814 = smul.addr %s813, 16
          %s815 = scalar_lea.vmem [#allocation2], %s814
          %816 = dma.done %s812, 256
        $region52: #{_forward_impl.3} parent=47 // pred_fallthru
          _
      $region48: #{_forward_impl.3} parent=5 // pred_fallthru
        _
    $region6: #{_forward_impl.3} parent=1 // loop_footer
      %s18 = sadd.s32 1, %s14
    $region7: #{_forward_impl.3} parent=1 // loop_footer_branch
      %13 = sbr.rel target = $region3
    $region8: #{_forward_impl.3} parent=1 // loop_exit
      _
    %817 = vsyncpa [#allocation3], 1
    %s818 = scalar_lea.sflag [#allocation3], 1
    %819 = vsyncpa %s818, 1

</llo_original>
